<compile_context>
chip_gen: v6e
topology: v6e:2x2x1
jax: 0.10.0
libtpu: 0.0.40
codegen_flags: <defaults>
</compile_context>

<pallas_src>
import jax
import jax.numpy as jnp
from jax.experimental import pallas as pl
from jax.experimental.pallas import tpu as pltpu

_LANE = 128
_TARGET_BLOCK_BYTES = 2 * 1024 * 1024  # ~2 MiB per buffer


def _sigmoid_kernel(x_ref, o_ref):
    x = x_ref[...]
    # sigmoid(x) == 0.5 * (tanh(x / 2) + 1): one EUP op + two cheap VPU ops,
    # avoiding exp + full-precision divide on the same narrow path.
    o_ref[...] = 0.5 * (jnp.tanh(0.5 * x) + 1.0)


def _round_up(v, m):
    return (v + m - 1) // m * m


def sigmoid_pallas(x: jax.Array) -> jax.Array:
    """Applies sigmoid elementwise, matching nn.Sigmoid() semantics."""
    orig_shape = x.shape
    dtype = x.dtype

    flat = x.reshape(-1)
    n = flat.shape[0]

    # Pick the widest lane-dense slab width (multiple of 128) that divides n
    # exactly, so no wrapper-side pad / slice (each is a full-array HBM copy).
    width = None
    for w in (1024, 512, 256, _LANE):
        if n % w == 0:
            width = w
            break

    padded = False
    if width is None:
        # Oddly-sized input: minimal pad to one partial 128-lane row.
        width = _LANE
        n_pad = _round_up(n, _LANE)
        flat = jnp.pad(flat, (0, n_pad - n))
        padded = True

    rows = flat.shape[0] // width
    x2d = flat.reshape(rows, width)

    # Block sizing: ~2 MiB per buffer. With input + output each double-buffered
    # that's ~8 MiB VMEM, well within v5e/v6e (128 MiB) and v7x (64 MiB phys /
    # 32 MiB scoped default) -- no vmem_limit_bytes override needed.
    itemsize = jnp.dtype(dtype).itemsize
    target_rows = max(8, _TARGET_BLOCK_BYTES // (width * itemsize))
    if rows <= target_rows:
        block_rows = rows                      # full extent: always legal
    else:
        block_rows = (target_rows // 8) * 8    # multiple of 8 sublanes

    grid = (pl.cdiv(rows, block_rows),)

    out2d = pl.pallas_call(
        _sigmoid_kernel,
        out_shape=jax.ShapeDtypeStruct((rows, width), dtype),
        grid_spec=pltpu.PrefetchScalarGridSpec(
            num_scalar_prefetch=0,
            grid=grid,
            in_specs=[pl.BlockSpec((block_rows, width), lambda i: (i, 0))],
            out_specs=pl.BlockSpec((block_rows, width), lambda i: (i, 0)),
        ),
        # Row grid is independent -> shards across the 2 TensorCores on v7x;
        # harmless (near-zero cost) on single-TC v5e/v6e.
        compiler_params=pltpu.CompilerParams(
            dimension_semantics=("parallel",),
        ),
    )(x2d)

    out = out2d.reshape(-1)
    if padded:
        out = out[:n]
    return out.reshape(orig_shape)


if __name__ == "__main__":
    key = jax.random.PRNGKey(0)
    # NCHW input, small shapes: batch=2, channels=4, spatial=16x16.
    x = jax.random.normal(key, (2, 4, 16, 16), dtype=jnp.float32)

    y = sigmoid_pallas(x)
    jax.block_until_ready(y)

    # Sanity check against pure-JAX reference.
    y_ref = jax.nn.sigmoid(x)
    assert y.shape == x.shape and y.dtype == x.dtype
    assert jnp.allclose(y, y_ref, atol=1e-6, rtol=1e-6)
    print("KERNEL_OK")
</pallas_src>

<mosaic_0001>
module attributes {stable_mosaic.version = 11 : i64} {
  func.func @_sigmoid_kernel(%arg0: i32, %arg1: memref<2x1024xf32, #tpu.memory_space<vmem>>, %arg2: memref<2x1024xf32, #tpu.memory_space<vmem>>) attributes {dimension_semantics = [#tpu.dimension_semantics<parallel>], iteration_bounds = array<i64: 1>, scalar_prefetch = 0 : i64, scratch_operands = 0 : i64, tpu.core_type = #tpu.core_type<tc>, window_params = [{transform_indices = @transform_0, window_bounds = array<i64: 2, 1024>}, {transform_indices = @transform_1, window_bounds = array<i64: 2, 1024>}]} {
    %c0 = arith.constant 0 : index
    %c0_0 = arith.constant 0 : index
    %0 = vector.load %arg1[%c0, %c0_0] : memref<2x1024xf32, #tpu.memory_space<vmem>>, vector<2x1024xf32>
    %cst = arith.constant 5.000000e-01 : f32
    %1 = vector.broadcast %cst : f32 to vector<2x1024xf32>
    %2 = arith.mulf %1, %0 : vector<2x1024xf32>
    %3 = math.tanh %2 : vector<2x1024xf32>
    %cst_1 = arith.constant 1.000000e+00 : f32
    %4 = vector.broadcast %cst_1 : f32 to vector<2x1024xf32>
    %5 = arith.addf %3, %4 : vector<2x1024xf32>
    %cst_2 = arith.constant 5.000000e-01 : f32
    %6 = vector.broadcast %cst_2 : f32 to vector<2x1024xf32>
    %7 = arith.mulf %6, %5 : vector<2x1024xf32>
    %c0_3 = arith.constant 0 : index
    %c0_4 = arith.constant 0 : index
    %8 = vector.load %arg2[%c0_3, %c0_4] : memref<2x1024xf32, #tpu.memory_space<vmem>>, vector<2x1024xf32>
    tpu.vector_store %arg2[%c0_3, %c0_4], %7 {strides = array<i32>} : memref<2x1024xf32, #tpu.memory_space<vmem>>, vector<2x1024xf32>,
    return
  }
  func.func @transform_0(%arg0: i32) -> (i32, i32) {
    %c0_i32 = arith.constant 0 : i32
    %c0_i32_0 = arith.constant 0 : i32
    return %arg0, %c0_i32 : i32, i32
  }
  func.func @transform_1(%arg0: i32) -> (i32, i32) {
    %c0_i32 = arith.constant 0 : i32
    %c0_i32_0 = arith.constant 0 : i32
    return %arg0, %c0_i32 : i32, i32
  }
}

</mosaic_0001>

<llo_original>
// kernel: tpu_custom_call.1
$region0: #{tpu_custom_call.1}
  #allocation0 [shape = 'u32[]', space=smem, size = 0x4, offset = 0x4, fixed_abs, tag = 'smem constant byte address 0x4 - core index']
  #allocation1 [shape = 'u32[144,128]{1,0:T(1,128)}', space=vmem, size = 0x12000, scoped, tag = 'internal scratch']
  %s0 = inlined_call_operand.hbm [shape: f32[2,1024], index: 0, kind: input, shape index: {}]
  %s1 = inlined_call_operand.hbm [shape: f32[2,1024], index: 1, kind: output, shape index: {}]
  %s2 = sld [smem:[#allocation0]]
  $region18: #{tpu_custom_call.1} parent=0
    _
  %s4 = ssub.s32 1, %s2
  %s5 = scalar_select 0, %s4, %s2
  $region1: #{tpu_custom_call.1} parent=0
    #allocation2 [shape = 'u8[8192]{0}', space=vmem, size = 0x2000, scoped, tag = 'input window, operand 0, single buffered']
    #allocation3 [shape = 's32[1]{0}', space=sflag, size = 0x4, scoped, tag = 'scoped memory for tpu_custom_call.1']
    #allocation4 [shape = 's32[1]{0}', space=sflag, size = 0x4, scoped, tag = 'scoped memory for tpu_custom_call.1']
    #allocation5 [shape = 'u8[8192]{0}', space=vmem, size = 0x2000, scoped, tag = 'output window, operand 0, single buffered']
    %6 = vsyncpa [#allocation3], 0
    %7 = vsyncpa [#allocation4], 0
    // Predicated region
    $region2: #{tpu_custom_call.1} parent=1 // pred_check
      _
    $region3: #{tpu_custom_call.1} parent=1 // pred_check_branch
      %9 = sbr.rel (0) target = $region5
    $region4: #{tpu_custom_call.1} parent=1 // pred_region
      %s11 = ssub.s32 256, 256
      %12 = vsyncadd [#allocation3], %s11
      %s14 = sshll.u32 [#allocation2], 4
      %s15 = int_to_ptr.vmem [resolvable:$true] %s14
      %17 = dma.hbm_to_vmem [thread:$0]  %s0, 256, %s15, [#allocation3]
    $region5: #{tpu_custom_call.1} parent=1 // pred_fallthru
      _
    // Predicated region
    $region6: #{tpu_custom_call.1} parent=1 // pred_check
      _
    $region7: #{tpu_custom_call.1} parent=1 // pred_check_branch
      %19 = sbr.rel (0) target = $region9
    $region8: #{tpu_custom_call.1} parent=1 // pred_region
      %20 = dma.done [#allocation3], 256
    $region9: #{tpu_custom_call.1} parent=1 // pred_fallthru
      _
    %v21 = vld [vmem:[#allocation2] sm:$0xff]
    %v22 = vld [vmem:[#allocation2 + $0x8] sm:$0xff]
    %v23 = vmul.f32 %v21, 0.5
    %v24 = vmul.f32 %v22, 0.5
    %v25 = vtanh.pop %v23
    %v26 = vtanh.pop %v24
    %v27 = vadd.f32 %v25, 1.0
    %v28 = vadd.f32 %v26, 1.0
    %v29 = vmul.f32 %v27, 0.5
    %v30 = vmul.f32 %v28, 0.5
    %31 = vst [vmem:[#allocation5] sm:$0xff] %v29
    %32 = vst [vmem:[#allocation5 + $0x8] sm:$0xff] %v30
    // Predicated region
    $region10: #{tpu_custom_call.1} parent=1 // pred_check
      _
    $region11: #{tpu_custom_call.1} parent=1 // pred_check_branch
      %34 = sbr.rel (0) target = $region13
    $region12: #{tpu_custom_call.1} parent=1 // pred_region
      %s36 = ssub.s32 256, 256
      %37 = vsyncadd [#allocation4], %s36
      %s39 = sshll.u32 [#allocation5], 4
      %s40 = int_to_ptr.vmem [resolvable:$true] %s39
      %42 = dma.vmem_to_hbm [thread:$0]  %s40, 256, %s1, [#allocation4]
    $region13: #{tpu_custom_call.1} parent=1 // pred_fallthru
      _
    // Predicated region
    $region14: #{tpu_custom_call.1} parent=1 // pred_check
      _
    $region15: #{tpu_custom_call.1} parent=1 // pred_check_branch
      %44 = sbr.rel (0) target = $region17
    $region16: #{tpu_custom_call.1} parent=1 // pred_region
      %45 = dma.done [#allocation4], 256
    $region17: #{tpu_custom_call.1} parent=1 // pred_fallthru
      _
    %46 = vsyncpa [#allocation3], 1
    %47 = vsyncpa [#allocation4], 1

</llo_original>
